<compile_context>
chip_gen: v6e
topology: v6e:2x2x1
jax: 0.10.0
libtpu: 0.0.40
codegen_flags: <defaults>
</compile_context>

<pallas_src>
import functools

import jax
import jax.numpy as jnp
from jax.experimental import pallas as pl
from jax.experimental.pallas import tpu as pltpu


def _round_up(n: int, m: int) -> int:
    return ((n + m - 1) // m) * m


def _vmem_capacity_bytes() -> int:
    """Physical VMEM per TensorCore; conservative fallback if the query fails."""
    try:
        info = pltpu.get_tpu_info()
        cap = getattr(info, "vmem_capacity_bytes", None)
        if cap:
            return int(cap)
    except Exception:
        pass
    return 64 << 20  # v7x per-TC VMEM (smallest across generations)


def _mlp_kernel(x_ref, w1_ref, b1_ref, w2_ref, b2_ref, w3_ref, b3_ref, o_ref):
    # fc1 + ReLU. MXU accumulation in f32 regardless of operand dtype; the
    # activation is cast back to the (possibly bf16) compute dtype exactly once
    # so no f32 intermediate stays live into the next matmul.
    h1 = jnp.dot(x_ref[...], w1_ref[...], preferred_element_type=jnp.float32)
    h1 = jnp.maximum(h1 + b1_ref[...], 0.0).astype(w2_ref.dtype)
    # fc2 + ReLU
    h2 = jnp.dot(h1, w2_ref[...], preferred_element_type=jnp.float32)
    h2 = jnp.maximum(h2 + b2_ref[...], 0.0).astype(w3_ref.dtype)
    # fc3 (no activation)
    out = jnp.dot(h2, w3_ref[...], preferred_element_type=jnp.float32)
    o_ref[...] = (out + b3_ref[...]).astype(o_ref.dtype)


def two_layer_fc(x, params, *, block_batch=512, compute_dtype=jnp.bfloat16,
                 out_dtype=jnp.float32):
    """Forward pass of TwoLayerFC.

    x: [B, num_in] float32.
    params: dict with w1,b1,w2,b2,w3,b3; weights stored as [in, out]
            (i.e. PyTorch W.T), biases as [1, out].
    block_batch: target batch tile (rows per grid step).
    compute_dtype: dtype of x / weights fed to the MXU (bf16 default for MXU
                   peak on all generations); accumulation is always f32.
    out_dtype: dtype of the returned activations.
    """
    w1, b1 = params["w1"], params["b1"]
    w2, b2 = params["w2"], params["b2"]
    w3, b3 = params["w3"], params["b3"]

    B, num_in = x.shape
    hidden = w1.shape[1]
    num_out = w3.shape[1]

    cdt = jnp.dtype(compute_dtype)
    odt = jnp.dtype(out_dtype)

    # ---- pad feature dims to 256 (fills the 2x256x256 MXUs on v6e/v7x and
    #      keeps every load/store lane-dense); exact zero padding -----------
    FEAT = 256
    Kp = _round_up(num_in, FEAT)   # fc1 contraction dim
    Hp = _round_up(hidden, FEAT)   # hidden width
    Np = _round_up(num_out, FEAT)  # output width

    # ---- batch tile: packed-sublane aligned, 256-row target, and an even
    #      number (>= 2) of tiles so both v7x TensorCores get balanced work
    #      and the x/out DMA pipeline has something to overlap --------------
    row_align = 16 if cdt.itemsize == 2 else 8
    Bp_min = _round_up(B, row_align)
    TB = max(row_align,
             min(_round_up(block_batch, 256),
                 _round_up(pl.cdiv(Bp_min, 2), row_align)))
    Bp = _round_up(B, TB)
    nb = Bp // TB
    if nb % 2:  # at most one extra (all-padding) tile; keeps cores balanced
        nb += 1
        Bp = nb * TB

    def pad2(a, r, c, dtype):
        return jnp.pad(a, ((0, r - a.shape[0]), (0, c - a.shape[1]))).astype(dtype)

    xp = pad2(x, Bp, Kp, cdt)
    w1p = pad2(w1, Kp, Hp, cdt)
    w2p = pad2(w2, Hp, Hp, cdt)
    w3p = pad2(w3, Hp, Np, cdt)
    b1p = pad2(b1, 1, Hp, jnp.float32)
    b2p = pad2(b2, 1, Hp, jnp.float32)
    b3p = pad2(b3, 1, Np, jnp.float32)

    # ---- generation-aware VMEM budget -------------------------------------
    isz, osz = cdt.itemsize, odt.itemsize
    weight_bytes = (Kp * Hp + Hp * Hp + Hp * Np) * isz + (2 * Hp + Np) * 4
    stream_bytes = 2 * TB * (Kp * isz + Np * osz)      # double-buffered x / out
    scratch_bytes = TB * Hp * (4 + isz) * 2            # f32 acc + cast activations
    need = weight_bytes + stream_bytes + scratch_bytes

    vmem_ceiling = int(_vmem_capacity_bytes() * 0.80)  # headroom for compiler scratch
    if weight_bytes + stream_bytes > vmem_ceiling:
        raise ValueError(
            f"Resident weights + streamed tiles ({(weight_bytes + stream_bytes) >> 20} MiB) "
            f"exceed the VMEM ceiling ({vmem_ceiling >> 20} MiB); "
            "reduce hidden_dim / block_batch (hidden-tiled fallback not implemented).")
    vmem_limit = int(min(max(int(need * 1.5), 32 << 20), vmem_ceiling))

    flops = 2 * Bp * (Kp * Hp + Hp * Hp + Hp * Np)
    bytes_accessed = Bp * Kp * isz + Bp * Np * osz + weight_bytes
    cost = pl.CostEstimate(flops=flops, transcendentals=0,
                           bytes_accessed=bytes_accessed)

    def stream_spec(cols):
        return pl.BlockSpec((TB, cols), lambda i: (i, 0))

    def const_spec(shape):
        # Constant-index block: single-buffer it (double-buffering a block that
        # never changes only burns VMEM).
        try:
            return pl.BlockSpec(shape, lambda i: (0, 0),
                                pipeline_mode=pl.Buffered(1))
        except TypeError:  # older BlockSpec signature without pipeline_mode
            return pl.BlockSpec(shape, lambda i: (0, 0))

    out_padded = pl.pallas_call(
        _mlp_kernel,
        out_shape=jax.ShapeDtypeStruct((Bp, Np), odt),
        grid=(nb,),
        in_specs=[
            stream_spec(Kp),            # x tile   (pipelined)
            const_spec((Kp, Hp)),       # w1       (resident, single-buffered)
            const_spec((1, Hp)),        # b1
            const_spec((Hp, Hp)),       # w2
            const_spec((1, Hp)),        # b2
            const_spec((Hp, Np)),       # w3
            const_spec((1, Np)),        # b3
        ],
        out_specs=stream_spec(Np),      # lane-dense output tile
        compiler_params=pltpu.CompilerParams(
            dimension_semantics=("parallel",),
            vmem_limit_bytes=vmem_limit,
        ),
        cost_estimate=cost,
    )(xp, w1p, b1p, w2p, b2p, w3p, b3p)

    return out_padded[:B, :num_out]


def init_params(key, num_in, num_out, hidden_dim):
    """Deterministic init mimicking torch.nn.Linear's U(-1/sqrt(fan_in), 1/sqrt(fan_in)).
    Weights stored as [in, out] (transposed vs PyTorch)."""
    ks = jax.random.split(key, 6)

    def linear(kw, kb, fan_in, fan_out):
        bound = 1.0 / jnp.sqrt(jnp.float32(fan_in))
        w = jax.random.uniform(kw, (fan_in, fan_out), jnp.float32, -bound, bound)
        b = jax.random.uniform(kb, (1, fan_out), jnp.float32, -bound, bound)
        return w, b

    w1, b1 = linear(ks[0], ks[1], num_in, hidden_dim)
    w2, b2 = linear(ks[2], ks[3], hidden_dim, hidden_dim)
    w3, b3 = linear(ks[4], ks[5], hidden_dim, num_out)
    return {"w1": w1, "b1": b1, "w2": w2, "b2": b2, "w3": w3, "b3": b3}


if __name__ == "__main__":
    key = jax.random.PRNGKey(0)
    k_x, k_p = jax.random.split(key)

    batch, num_in, num_out, hidden_dim = 8, 16, 8, 64
    x = jax.random.normal(k_x, (batch, num_in), jnp.float32)
    params = init_params(k_p, num_in, num_out, hidden_dim)

    # Pure-JAX reference (same math as the PyTorch forward).
    h = jnp.maximum(x @ params["w1"] + params["b1"], 0.0)
    h = jnp.maximum(h @ params["w2"] + params["b2"], 0.0)
    ref = h @ params["w3"] + params["b3"]

    # f32 operand path: tight numerics check against the reference.
    fwd_f32 = jax.jit(functools.partial(two_layer_fc, compute_dtype=jnp.float32))
    out_f32 = jax.block_until_ready(fwd_f32(x, params))
    assert out_f32.shape == (batch, num_out)
    assert jnp.allclose(out_f32, ref, atol=1e-4, rtol=1e-4), (
        float(jnp.max(jnp.abs(out_f32 - ref))))

    # Default performance path: bf16 operands on the MXU, f32 accumulation.
    fwd = jax.jit(two_layer_fc)
    out = jax.block_until_ready(fwd(x, params))
    assert out.shape == (batch, num_out)
    assert jnp.allclose(out, ref, atol=5e-2, rtol=5e-2), (
        float(jnp.max(jnp.abs(out - ref))))

    print("KERNEL_OK")
</pallas_src>

<mosaic_0001>
module attributes {stable_mosaic.version = 11 : i64} {
  func.func @_mlp_kernel(%arg0: i32, %arg1: memref<8x256xf32, #tpu.memory_space<vmem>>, %arg2: memref<256x256xf32, #tpu.memory_space<vmem>>, %arg3: memref<1x256xf32, #tpu.memory_space<vmem>>, %arg4: memref<256x256xf32, #tpu.memory_space<vmem>>, %arg5: memref<1x256xf32, #tpu.memory_space<vmem>>, %arg6: memref<256x256xf32, #tpu.memory_space<vmem>>, %arg7: memref<1x256xf32, #tpu.memory_space<vmem>>, %arg8: memref<8x256xf32, #tpu.memory_space<vmem>>) attributes {dimension_semantics = [#tpu.dimension_semantics<parallel>], iteration_bounds = array<i64: 2>, scalar_prefetch = 0 : i64, scratch_operands = 0 : i64, tpu.core_type = #tpu.core_type<tc>, window_params = [{transform_indices = @transform_0, window_bounds = array<i64: 8, 256>}, {pipeline_mode = #tpu.pipeline_mode<synchronous>, transform_indices = @transform_1, window_bounds = array<i64: 256, 256>}, {pipeline_mode = #tpu.pipeline_mode<synchronous>, transform_indices = @transform_2, window_bounds = array<i64: 1, 256>}, {pipeline_mode = #tpu.pipeline_mode<synchronous>, transform_indices = @transform_3, window_bounds = array<i64: 256, 256>}, {pipeline_mode = #tpu.pipeline_mode<synchronous>, transform_indices = @transform_4, window_bounds = array<i64: 1, 256>}, {pipeline_mode = #tpu.pipeline_mode<synchronous>, transform_indices = @transform_5, window_bounds = array<i64: 256, 256>}, {pipeline_mode = #tpu.pipeline_mode<synchronous>, transform_indices = @transform_6, window_bounds = array<i64: 1, 256>}, {transform_indices = @transform_7, window_bounds = array<i64: 8, 256>}]} {
    %c0 = arith.constant 0 : index
    %c0_0 = arith.constant 0 : index
    %0 = vector.load %arg1[%c0, %c0_0] : memref<8x256xf32, #tpu.memory_space<vmem>>, vector<8x256xf32>
    %c0_1 = arith.constant 0 : index
    %c0_2 = arith.constant 0 : index
    %1 = vector.load %arg2[%c0_1, %c0_2] : memref<256x256xf32, #tpu.memory_space<vmem>>, vector<256x256xf32>
    %cst = arith.constant dense<0.000000e+00> : vector<8x256xf32>
    %2 = tpu.matmul %0, %1, %cst {dimension_numbers = #tpu.dot_dimension_numbers<[1], [0], [0], [1], [0, 0, 1, 1], [], []>} : vector<8x256xf32>, vector<256x256xf32>, vector<8x256xf32> -> vector<8x256xf32>
    %c0_3 = arith.constant 0 : index
    %c0_4 = arith.constant 0 : index
    %3 = vector.load %arg3[%c0_3, %c0_4] : memref<1x256xf32, #tpu.memory_space<vmem>>, vector<1x256xf32>
    %4 = vector.broadcast %3 : vector<1x256xf32> to vector<8x256xf32>
    %5 = arith.addf %2, %4 : vector<8x256xf32>
    %cst_5 = arith.constant 0.000000e+00 : f32
    %6 = vector.broadcast %cst_5 : f32 to vector<8x256xf32>
    %7 = arith.maximumf %5, %6 : vector<8x256xf32>
    %c0_6 = arith.constant 0 : index
    %c0_7 = arith.constant 0 : index
    %8 = vector.load %arg4[%c0_6, %c0_7] : memref<256x256xf32, #tpu.memory_space<vmem>>, vector<256x256xf32>
    %cst_8 = arith.constant dense<0.000000e+00> : vector<8x256xf32>
    %9 = tpu.matmul %7, %8, %cst_8 {dimension_numbers = #tpu.dot_dimension_numbers<[1], [0], [0], [1], [0, 0, 1, 1], [], []>} : vector<8x256xf32>, vector<256x256xf32>, vector<8x256xf32> -> vector<8x256xf32>
    %c0_9 = arith.constant 0 : index
    %c0_10 = arith.constant 0 : index
    %10 = vector.load %arg5[%c0_9, %c0_10] : memref<1x256xf32, #tpu.memory_space<vmem>>, vector<1x256xf32>
    %11 = vector.broadcast %10 : vector<1x256xf32> to vector<8x256xf32>
    %12 = arith.addf %9, %11 : vector<8x256xf32>
    %cst_11 = arith.constant 0.000000e+00 : f32
    %13 = vector.broadcast %cst_11 : f32 to vector<8x256xf32>
    %14 = arith.maximumf %12, %13 : vector<8x256xf32>
    %c0_12 = arith.constant 0 : index
    %c0_13 = arith.constant 0 : index
    %15 = vector.load %arg6[%c0_12, %c0_13] : memref<256x256xf32, #tpu.memory_space<vmem>>, vector<256x256xf32>
    %cst_14 = arith.constant dense<0.000000e+00> : vector<8x256xf32>
    %16 = tpu.matmul %14, %15, %cst_14 {dimension_numbers = #tpu.dot_dimension_numbers<[1], [0], [0], [1], [0, 0, 1, 1], [], []>} : vector<8x256xf32>, vector<256x256xf32>, vector<8x256xf32> -> vector<8x256xf32>
    %c0_15 = arith.constant 0 : index
    %c0_16 = arith.constant 0 : index
    %17 = vector.load %arg7[%c0_15, %c0_16] : memref<1x256xf32, #tpu.memory_space<vmem>>, vector<1x256xf32>
    %18 = vector.broadcast %17 : vector<1x256xf32> to vector<8x256xf32>
    %19 = arith.addf %16, %18 : vector<8x256xf32>
    %c0_17 = arith.constant 0 : index
    %c0_18 = arith.constant 0 : index
    %20 = vector.load %arg8[%c0_17, %c0_18] : memref<8x256xf32, #tpu.memory_space<vmem>>, vector<8x256xf32>
    tpu.vector_store %arg8[%c0_17, %c0_18], %19 {strides = array<i32>} : memref<8x256xf32, #tpu.memory_space<vmem>>, vector<8x256xf32>,
    return
  }
  func.func @transform_0(%arg0: i32) -> (i32, i32) {
    %c0_i32 = arith.constant 0 : i32
    %c0_i32_0 = arith.constant 0 : i32
    return %arg0, %c0_i32 : i32, i32
  }
  func.func @transform_1(%arg0: i32) -> (i32, i32) {
    %c0_i32 = arith.constant 0 : i32
    %c0_i32_0 = arith.constant 0 : i32
    %c0_i32_1 = arith.constant 0 : i32
    return %c0_i32, %c0_i32_0 : i32, i32
  }
  func.func @transform_2(%arg0: i32) -> (i32, i32) {
    %c0_i32 = arith.constant 0 : i32
    %c0_i32_0 = arith.constant 0 : i32
    %c0_i32_1 = arith.constant 0 : i32
    return %c0_i32, %c0_i32_0 : i32, i32
  }
  func.func @transform_3(%arg0: i32) -> (i32, i32) {
    %c0_i32 = arith.constant 0 : i32
    %c0_i32_0 = arith.constant 0 : i32
    %c0_i32_1 = arith.constant 0 : i32
    return %c0_i32, %c0_i32_0 : i32, i32
  }
  func.func @transform_4(%arg0: i32) -> (i32, i32) {
    %c0_i32 = arith.constant 0 : i32
    %c0_i32_0 = arith.constant 0 : i32
    %c0_i32_1 = arith.constant 0 : i32
    return %c0_i32, %c0_i32_0 : i32, i32
  }
  func.func @transform_5(%arg0: i32) -> (i32, i32) {
    %c0_i32 = arith.constant 0 : i32
    %c0_i32_0 = arith.constant 0 : i32
    %c0_i32_1 = arith.constant 0 : i32
    return %c0_i32, %c0_i32_0 : i32, i32
  }
  func.func @transform_6(%arg0: i32) -> (i32, i32) {
    %c0_i32 = arith.constant 0 : i32
    %c0_i32_0 = arith.constant 0 : i32
    %c0_i32_1 = arith.constant 0 : i32
    return %c0_i32, %c0_i32_0 : i32, i32
  }
  func.func @transform_7(%arg0: i32) -> (i32, i32) {
    %c0_i32 = arith.constant 0 : i32
    %c0_i32_0 = arith.constant 0 : i32
    return %arg0, %c0_i32 : i32, i32
  }
}

</mosaic_0001>

<llo_original>
// kernel: two_layer_fc.1
$region0: #{two_layer_fc.1}
  #allocation0 [shape = 'u32[]', space=smem, size = 0x4, offset = 0x4, fixed_abs, tag = 'smem constant byte address 0x4 - core index']
  #allocation1 [shape = 'u32[144,128]{1,0:T(1,128)}', space=vmem, size = 0x12000, scoped, tag = 'internal scratch']
  %s0 = inlined_call_operand.vmem [shape: f32[16,256], index: 0, kind: input, shape index: {}]
  %s1 = inlined_call_operand.vmem [shape: f32[256,256], index: 1, kind: input, shape index: {}]
  %s2 = inlined_call_operand.vmem [shape: f32[1,256], index: 2, kind: input, shape index: {}]
  %s3 = inlined_call_operand.vmem [shape: f32[256,256], index: 3, kind: input, shape index: {}]
  %s4 = inlined_call_operand.vmem [shape: f32[1,256], index: 4, kind: input, shape index: {}]
  %s5 = inlined_call_operand.vmem [shape: f32[256,256], index: 5, kind: input, shape index: {}]
  %s6 = inlined_call_operand.vmem [shape: f32[1,256], index: 6, kind: input, shape index: {}]
  %s7 = inlined_call_operand.vmem [shape: f32[16,256], index: 7, kind: output, shape index: {}]
  %s8 = sld [smem:[#allocation0]]
  $region61: #{two_layer_fc.1} parent=0
    _
  %s10 = ssub.s32 1, %s8
  %s11 = scalar_select 0, %s10, %s8
  loop: start=0, step=1, limit=4
  $region2: #{two_layer_fc.1} parent=0 // loop_pre_header
    _
  $region3: #{two_layer_fc.1} parent=0 // loop_header
    %s13 = sphi 0, %s17
    %p14 = scmp.ge.s32.totalorder %s13, 4
    %s23 = sphi 0, %s25
    %s26 = sphi 0, %s23
    %s27 = sphi 0, %s26
    %s43 = sphi 0, %s27
    %s47 = sphi 0, %s47
    %s49 = sphi 0, %s47
    %s50 = sphi 0, %s49
    %s64 = sphi 0, %s50
    %s68 = sphi 0, %s68
    %s70 = sphi 0, %s68
    %s71 = sphi 0, %s70
    %s85 = sphi 0, %s71
    %s89 = sphi 0, %s89
    %s91 = sphi 0, %s89
    %s92 = sphi 0, %s91
    %s106 = sphi 0, %s92
    %s110 = sphi 0, %s110
    %s112 = sphi 0, %s110
    %s113 = sphi 0, %s112
    %s127 = sphi 0, %s113
    %s131 = sphi 0, %s131
    %s133 = sphi 0, %s131
    %s134 = sphi 0, %s133
    %s148 = sphi 0, %s134
    %s152 = sphi 0, %s152
    %s154 = sphi 0, %s152
    %s155 = sphi 0, %s154
    %s169 = sphi 0, %s155
    %s175 = sphi 0, %s177
    %s178 = sphi 0, %s175
    %s179 = sphi 0, %s178
    %s195 = sphi 0, %s179
  $region4: #{two_layer_fc.1} parent=0 // loop_header_branch
    %16 = sbr.rel (%p14) target = $region8
  $region5: #{two_layer_fc.1} parent=0 // loop_body
    %s18 = ssub.s32 %s13, 1
    %s19 = ssub.s32 %s13, 2
    %s20 = sadd.s32 %s13, 1
    %s21 = ssub.s32 %s13, %s20
    %p22 = scmp.eq.s32.totalorder %s21, 0
    %s24 = sadd.s32 %s23, 1
    %s25 = scalar_select %p22, %s23, %s24
    %p28 = pneg %p22
    %p29 = scmp.eq.s32.totalorder %s13, 1
    %p30 = por %p28, %p29
    %p31 = scmp.ne.s32.totalorder %s23, %s26
    %p32 = scmp.eq.s32.totalorder %s13, 0
    %p33 = por %p31, %p32
    %p34 = scmp.ne.s32.totalorder %s23, %s26
    %p35 = scmp.eq.s32.totalorder %s18, 1
    %p36 = por %p34, %p35
    %p37 = scmp.ne.s32.totalorder %s26, %s27
    %p38 = scmp.eq.s32.totalorder %s18, 0
    %p39 = por %p37, %p38
    %p40 = scmp.ne.s32.totalorder %s26, %s27
    %p41 = scmp.eq.s32.totalorder %s19, 1
    %p42 = por %p40, %p41
    %p44 = scmp.ne.s32.totalorder %s27, %s43
    %p45 = scmp.eq.s32.totalorder %s19, 0
    %p46 = por %p44, %p45
    %s48 = sadd.s32 %s47, 1
    %p51 = scmp.eq.s32.totalorder %s13, 1
    %p52 = scmp.ne.s32.totalorder %s47, %s49
    %p53 = scmp.eq.s32.totalorder %s13, 0
    %p54 = por %p52, %p53
    %p55 = scmp.ne.s32.totalorder %s47, %s49
    %p56 = scmp.eq.s32.totalorder %s18, 1
    %p57 = por %p55, %p56
    %p58 = scmp.ne.s32.totalorder %s49, %s50
    %p59 = scmp.eq.s32.totalorder %s18, 0
    %p60 = por %p58, %p59
    %p61 = scmp.ne.s32.totalorder %s49, %s50
    %p62 = scmp.eq.s32.totalorder %s19, 1
    %p63 = por %p61, %p62
    %p65 = scmp.ne.s32.totalorder %s50, %s64
    %p66 = scmp.eq.s32.totalorder %s19, 0
    %p67 = por %p65, %p66
    %s69 = sadd.s32 %s68, 1
    %p72 = scmp.eq.s32.totalorder %s13, 1
    %p73 = scmp.ne.s32.totalorder %s68, %s70
    %p74 = scmp.eq.s32.totalorder %s13, 0
    %p75 = por %p73, %p74
    %p76 = scmp.ne.s32.totalorder %s68, %s70
    %p77 = scmp.eq.s32.totalorder %s18, 1
    %p78 = por %p76, %p77
    %p79 = scmp.ne.s32.totalorder %s70, %s71
    %p80 = scmp.eq.s32.totalorder %s18, 0
    %p81 = por %p79, %p80
    %p82 = scmp.ne.s32.totalorder %s70, %s71
    %p83 = scmp.eq.s32.totalorder %s19, 1
    %p84 = por %p82, %p83
    %p86 = scmp.ne.s32.totalorder %s71, %s85
    %p87 = scmp.eq.s32.totalorder %s19, 0
    %p88 = por %p86, %p87
    %s90 = sadd.s32 %s89, 1
    %p93 = scmp.eq.s32.totalorder %s13, 1
    %p94 = scmp.ne.s32.totalorder %s89, %s91
    %p95 = scmp.eq.s32.totalorder %s13, 0
    %p96 = por %p94, %p95
    %p97 = scmp.ne.s32.totalorder %s89, %s91
    %p98 = scmp.eq.s32.totalorder %s18, 1
    %p99 = por %p97, %p98
    %p100 = scmp.ne.s32.totalorder %s91, %s92
    %p101 = scmp.eq.s32.totalorder %s18, 0
    %p102 = por %p100, %p101
    %p103 = scmp.ne.s32.totalorder %s91, %s92
    %p104 = scmp.eq.s32.totalorder %s19, 1
    %p105 = por %p103, %p104
    %p107 = scmp.ne.s32.totalorder %s92, %s106
    %p108 = scmp.eq.s32.totalorder %s19, 0
    %p109 = por %p107, %p108
    %s111 = sadd.s32 %s110, 1
    %p114 = scmp.eq.s32.totalorder %s13, 1
    %p115 = scmp.ne.s32.totalorder %s110, %s112
    %p116 = scmp.eq.s32.totalorder %s13, 0
    %p117 = por %p115, %p116
    %p118 = scmp.ne.s32.totalorder %s110, %s112
    %p119 = scmp.eq.s32.totalorder %s18, 1
    %p120 = por %p118, %p119
    %p121 = scmp.ne.s32.totalorder %s112, %s113
    %p122 = scmp.eq.s32.totalorder %s18, 0
    %p123 = por %p121, %p122
    %p124 = scmp.ne.s32.totalorder %s112, %s113
    %p125 = scmp.eq.s32.totalorder %s19, 1
    %p126 = por %p124, %p125
    %p128 = scmp.ne.s32.totalorder %s113, %s127
    %p129 = scmp.eq.s32.totalorder %s19, 0
    %p130 = por %p128, %p129
    %s132 = sadd.s32 %s131, 1
    %p135 = scmp.eq.s32.totalorder %s13, 1
    %p136 = scmp.ne.s32.totalorder %s131, %s133
    %p137 = scmp.eq.s32.totalorder %s13, 0
    %p138 = por %p136, %p137
    %p139 = scmp.ne.s32.totalorder %s131, %s133
    %p140 = scmp.eq.s32.totalorder %s18, 1
    %p141 = por %p139, %p140
    %p142 = scmp.ne.s32.totalorder %s133, %s134
    %p143 = scmp.eq.s32.totalorder %s18, 0
    %p144 = por %p142, %p143
    %p145 = scmp.ne.s32.totalorder %s133, %s134
    %p146 = scmp.eq.s32.totalorder %s19, 1
    %p147 = por %p145, %p146
    %p149 = scmp.ne.s32.totalorder %s134, %s148
    %p150 = scmp.eq.s32.totalorder %s19, 0
    %p151 = por %p149, %p150
    %s153 = sadd.s32 %s152, 1
    %p156 = scmp.eq.s32.totalorder %s13, 1
    %p157 = scmp.ne.s32.totalorder %s152, %s154
    %p158 = scmp.eq.s32.totalorder %s13, 0
    %p159 = por %p157, %p158
    %p160 = scmp.ne.s32.totalorder %s152, %s154
    %p161 = scmp.eq.s32.totalorder %s18, 1
    %p162 = por %p160, %p161
    %p163 = scmp.ne.s32.totalorder %s154, %s155
    %p164 = scmp.eq.s32.totalorder %s18, 0
    %p165 = por %p163, %p164
    %p166 = scmp.ne.s32.totalorder %s154, %s155
    %p167 = scmp.eq.s32.totalorder %s19, 1
    %p168 = por %p166, %p167
    %p170 = scmp.ne.s32.totalorder %s155, %s169
    %p171 = scmp.eq.s32.totalorder %s19, 0
    %p172 = por %p170, %p171
    %s173 = ssub.s32 %s13, %s20
    %p174 = scmp.eq.s32.totalorder %s173, 0
    %s176 = sadd.s32 %s175, 1
    %s177 = scalar_select %p174, %s175, %s176
    %p180 = pneg %p174
    %p181 = scmp.eq.s32.totalorder %s13, 1
    %p182 = por %p180, %p181
    %p183 = scmp.ne.s32.totalorder %s175, %s178
    %p184 = scmp.eq.s32.totalorder %s13, 0
    %p185 = por %p183, %p184
    %p186 = scmp.ne.s32.totalorder %s175, %s178
    %p187 = scmp.eq.s32.totalorder %s18, 1
    %p188 = por %p186, %p187
    %p189 = scmp.ne.s32.totalorder %s178, %s179
    %p190 = scmp.eq.s32.totalorder %s18, 0
    %p191 = por %p189, %p190
    %p192 = scmp.ne.s32.totalorder %s178, %s179
    %p193 = scmp.eq.s32.totalorder %s19, 1
    %p194 = por %p192, %p193
    %p196 = scmp.ne.s32.totalorder %s179, %s195
    %p197 = scmp.eq.s32.totalorder %s19, 0
    %p198 = por %p196, %p197
    %p199 = scmp.le.s32.totalorder 1, %s13
    %p200 = scmp.lt.s32.totalorder %s13, 3
    %p201 = pnand %p199, %p200
    %p202 = pneg %p201
    // Predicated region
    $region9: #{two_layer_fc.1} parent=5 // pred_check
      _
    $region10: #{two_layer_fc.1} parent=5 // pred_check_branch
      %204 = sbr.rel (%p201) target = $region12
    $region11: #{two_layer_fc.1} parent=5 // pred_region
      %s205 = ssub.s32 %s13, 1
      // Predicated region
      $region13: #{two_layer_fc.1} parent=11 // pred_check
        %p206 = pneg %p60
      $region14: #{two_layer_fc.1} parent=11 // pred_check_branch
        %208 = sbr.rel (%p206) target = $region16
      $region15: #{two_layer_fc.1} parent=11 // pred_region
        _
      $region16: #{two_layer_fc.1} parent=11 // pred_fallthru
        _
      // Predicated region
      $region17: #{two_layer_fc.1} parent=11 // pred_check
        %p209 = pneg %p81
      $region18: #{two_layer_fc.1} parent=11 // pred_check_branch
        %211 = sbr.rel (%p209) target = $region20
      $region19: #{two_layer_fc.1} parent=11 // pred_region
        _
      $region20: #{two_layer_fc.1} parent=11 // pred_fallthru
        _
      // Predicated region
      $region21: #{two_layer_fc.1} parent=11 // pred_check
        %p212 = pneg %p102
      $region22: #{two_layer_fc.1} parent=11 // pred_check_branch
        %214 = sbr.rel (%p212) target = $region24
      $region23: #{two_layer_fc.1} parent=11 // pred_region
        _
      $region24: #{two_layer_fc.1} parent=11 // pred_fallthru
        _
      // Predicated region
      $region25: #{two_layer_fc.1} parent=11 // pred_check
        %p215 = pneg %p123
      $region26: #{two_layer_fc.1} parent=11 // pred_check_branch
        %217 = sbr.rel (%p215) target = $region28
      $region27: #{two_layer_fc.1} parent=11 // pred_region
        _
      $region28: #{two_layer_fc.1} parent=11 // pred_fallthru
        _
      // Predicated region
      $region29: #{two_layer_fc.1} parent=11 // pred_check
        %p218 = pneg %p144
      $region30: #{two_layer_fc.1} parent=11 // pred_check_branch
        %220 = sbr.rel (%p218) target = $region32
      $region31: #{two_layer_fc.1} parent=11 // pred_region
        _
      $region32: #{two_layer_fc.1} parent=11 // pred_fallthru
        _
      // Predicated region
      $region33: #{two_layer_fc.1} parent=11 // pred_check
        %p221 = pneg %p165
      $region34: #{two_layer_fc.1} parent=11 // pred_check_branch
        %223 = sbr.rel (%p221) target = $region36
      $region35: #{two_layer_fc.1} parent=11 // pred_region
        _
      $region36: #{two_layer_fc.1} parent=11 // pred_fallthru
        _
    $region12: #{two_layer_fc.1} parent=5 // pred_fallthru
      _
    %p224 = scmp.lt.s32.totalorder %s13, 2
    // Predicated region
    $region37: #{two_layer_fc.1} parent=5 // pred_check
      %p225 = pneg %p224
    $region38: #{two_layer_fc.1} parent=5 // pred_check_branch
      %227 = sbr.rel (%p225) target = $region40
    $region39: #{two_layer_fc.1} parent=5 // pred_region
      // Predicated region
      $region41: #{two_layer_fc.1} parent=39 // pred_check
        %p228 = pneg %p33
      $region42: #{two_layer_fc.1} parent=39 // pred_check_branch
        %230 = sbr.rel (%p228) target = $region44
      $region43: #{two_layer_fc.1} parent=39 // pred_region
        %p231 = scmp.lt.s32.totalorder %s13, 1
        %s232 = scalar_select %p231, %s13, 1
        %s233 = smul.addr %s232, 2
        %s234 = smul.addr %s233, 8
        %s235 = scalar_lea.vmem %s0, %s234
      $region44: #{two_layer_fc.1} parent=39 // pred_fallthru
        _
    $region40: #{two_layer_fc.1} parent=5 // pred_fallthru
      _
    %p236 = scmp.le.s32.totalorder 1, %s13
    %p237 = scmp.lt.s32.totalorder %s13, 3
    %p238 = pnand %p236, %p237
    %p239 = pneg %p238
    // Predicated region
    $region45: #{two_layer_fc.1} parent=5 // pred_check
      _
    $region46: #{two_layer_fc.1} parent=5 // pred_check_branch
      %241 = sbr.rel (%p238) target = $region48
    $region47: #{two_layer_fc.1} parent=5 // pred_region
      %s242 = ssub.s32 %s13, 1
      %p243 = scmp.lt.s32.totalorder %s18, 1
      %s244 = scalar_select %p243, %s18, 1
      %s245 = smul.addr %s244, 2
      %s246 = smul.addr %s245, 8
      %s247 = scalar_lea.vmem %s0, %s246
      %p248 = pneg %p39
      %p249 = pneg %p36
      %p250 = pneg %p60
      %p251 = pneg %p57
      %p252 = pneg %p81
      %p253 = pneg %p78
      %p254 = pneg %p102
      %p255 = pneg %p99
      %p256 = pneg %p123
      %p257 = pneg %p120
      %p258 = pneg %p144
      %p259 = pneg %p141
      %p260 = pneg %p165
      %p261 = pneg %p162
      %p262 = pneg %p191
      %p263 = pneg %p188
      %p264 = scmp.lt.s32.totalorder %s18, 1
      %s265 = scalar_select %p264, %s18, 1
      %s266 = smul.addr %s265, 2
      %s267 = smul.addr %s266, 8
      %s268 = scalar_lea.vmem %s7, %s267
      %p269 = scmp.lt.s32.totalorder %s18, 1
      %s270 = scalar_select %p269, %s18, 1
      %s271 = smul.addr %s270, 2
      %s272 = smul.addr %s271, 8
      %s273 = scalar_lea.vmem %s0, %s272
      %p274 = scmp.lt.s32.totalorder %s18, 1
      %s275 = scalar_select %p274, %s18, 1
      %s276 = smul.addr %s275, 2
      %s277 = smul.addr %s276, 8
      %s278 = scalar_lea.vmem %s7, %s277
      %v279 = vld [vmem:[%s273] sm:$0xff]
      %v280 = vld [vmem:[%s273 + $0x8] sm:$0xff]
      %v281 = vld [vmem:[%s1] sm:$0xff]
      %v282 = vld [vmem:[%s1 + $0x8] sm:$0xff]
      %v283 = vld [vmem:[%s1 + $0x10] sm:$0xff]
      %v284 = vld [vmem:[%s1 + $0x18] sm:$0xff]
      %v285 = vld [vmem:[%s1 + $0x20] sm:$0xff]
      %v286 = vld [vmem:[%s1 + $0x28] sm:$0xff]
      %v287 = vld [vmem:[%s1 + $0x30] sm:$0xff]
      %v288 = vld [vmem:[%s1 + $0x38] sm:$0xff]
      %v289 = vld [vmem:[%s1 + $0x40] sm:$0xff]
      %v290 = vld [vmem:[%s1 + $0x48] sm:$0xff]
      %v291 = vld [vmem:[%s1 + $0x50] sm:$0xff]
      %v292 = vld [vmem:[%s1 + $0x58] sm:$0xff]
      %v293 = vld [vmem:[%s1 + $0x60] sm:$0xff]
      %v294 = vld [vmem:[%s1 + $0x68] sm:$0xff]
      %v295 = vld [vmem:[%s1 + $0x70] sm:$0xff]
      %v296 = vld [vmem:[%s1 + $0x78] sm:$0xff]
      %v297 = vld [vmem:[%s1 + $0x80] sm:$0xff]
      %v298 = vld [vmem:[%s1 + $0x88] sm:$0xff]
      %v299 = vld [vmem:[%s1 + $0x90] sm:$0xff]
      %v300 = vld [vmem:[%s1 + $0x98] sm:$0xff]
      %v301 = vld [vmem:[%s1 + $0xa0] sm:$0xff]
      %v302 = vld [vmem:[%s1 + $0xa8] sm:$0xff]
      %v303 = vld [vmem:[%s1 + $0xb0] sm:$0xff]
      %v304 = vld [vmem:[%s1 + $0xb8] sm:$0xff]
      %v305 = vld [vmem:[%s1 + $0xc0] sm:$0xff]
      %v306 = vld [vmem:[%s1 + $0xc8] sm:$0xff]
      %v307 = vld [vmem:[%s1 + $0xd0] sm:$0xff]
      %v308 = vld [vmem:[%s1 + $0xd8] sm:$0xff]
      %v309 = vld [vmem:[%s1 + $0xe0] sm:$0xff]
      %v310 = vld [vmem:[%s1 + $0xe8] sm:$0xff]
      %v311 = vld [vmem:[%s1 + $0xf0] sm:$0xff]
      %v312 = vld [vmem:[%s1 + $0xf8] sm:$0xff]
      %v313 = vld [vmem:[%s1 + $0x100] sm:$0xff]
      %v314 = vld [vmem:[%s1 + $0x108] sm:$0xff]
      %v315 = vld [vmem:[%s1 + $0x110] sm:$0xff]
      %v316 = vld [vmem:[%s1 + $0x118] sm:$0xff]
      %v317 = vld [vmem:[%s1 + $0x120] sm:$0xff]
      %v318 = vld [vmem:[%s1 + $0x128] sm:$0xff]
      %v319 = vld [vmem:[%s1 + $0x130] sm:$0xff]
      %v320 = vld [vmem:[%s1 + $0x138] sm:$0xff]
      %v321 = vld [vmem:[%s1 + $0x140] sm:$0xff]
      %v322 = vld [vmem:[%s1 + $0x148] sm:$0xff]
      %v323 = vld [vmem:[%s1 + $0x150] sm:$0xff]
      %v324 = vld [vmem:[%s1 + $0x158] sm:$0xff]
      %v325 = vld [vmem:[%s1 + $0x160] sm:$0xff]
      %v326 = vld [vmem:[%s1 + $0x168] sm:$0xff]
      %v327 = vld [vmem:[%s1 + $0x170] sm:$0xff]
      %v328 = vld [vmem:[%s1 + $0x178] sm:$0xff]
      %v329 = vld [vmem:[%s1 + $0x180] sm:$0xff]
      %v330 = vld [vmem:[%s1 + $0x188] sm:$0xff]
      %v331 = vld [vmem:[%s1 + $0x190] sm:$0xff]
      %v332 = vld [vmem:[%s1 + $0x198] sm:$0xff]
      %v333 = vld [vmem:[%s1 + $0x1a0] sm:$0xff]
      %v334 = vld [vmem:[%s1 + $0x1a8] sm:$0xff]
      %v335 = vld [vmem:[%s1 + $0x1b0] sm:$0xff]
      %v336 = vld [vmem:[%s1 + $0x1b8] sm:$0xff]
      %v337 = vld [vmem:[%s1 + $0x1c0] sm:$0xff]
      %v338 = vld [vmem:[%s1 + $0x1c8] sm:$0xff]
      %v339 = vld [vmem:[%s1 + $0x1d0] sm:$0xff]
      %v340 = vld [vmem:[%s1 + $0x1d8] sm:$0xff]
      %v341 = vld [vmem:[%s1 + $0x1e0] sm:$0xff]
      %v342 = vld [vmem:[%s1 + $0x1e8] sm:$0xff]
      %v343 = vld [vmem:[%s1 + $0x1f0] sm:$0xff]
      %v344 = vld [vmem:[%s1 + $0x1f8] sm:$0xff]
      %v345 = vld [vmem:[%s2] sm:$0x3]
      %v347 = vlaneseq
      %v348 = vshrl.u32 %v347, 7
      %v349 = vsub.s32 0, %v348
      %v350 = vrot.slane %v345, %v349
      %v351 = vlaneseq
      %v352 = vshrl.u32 %v351, 7
      %v353 = vsub.s32 1, %v352
      %v354 = vrot.slane %v345, %v353
      %357 = vmatprep.subr.mxu0 %v312
      %358 = vmatpush1.msra.mxu0 %v311
      %359 = vmatprep.subr.mxu0 %v310
      %360 = vmatpush1.msra.mxu0 %v309
      %361 = vmatprep.subr.mxu0 %v308
      %362 = vmatpush1.msra.mxu0 %v307
      %363 = vmatprep.subr.mxu0 %v306
      %364 = vmatpush1.msra.mxu0 %v305
      %365 = vmatprep.subr.mxu0 %v304
      %366 = vmatpush1.msra.mxu0 %v303
      %367 = vmatprep.subr.mxu0 %v302
      %368 = vmatpush1.msra.mxu0 %v301
      %369 = vmatprep.subr.mxu0 %v300
      %370 = vmatpush1.msra.mxu0 %v299
      %371 = vmatprep.subr.mxu0 %v298
      %372 = vmatpush1.msra.mxu0 %v297
      %373 = vmatprep.subr.mxu0 %v296
      %374 = vmatpush1.msra.mxu0 %v295
      %375 = vmatprep.subr.mxu0 %v294
      %376 = vmatpush1.msra.mxu0 %v293
      %377 = vmatprep.subr.mxu0 %v292
      %378 = vmatpush1.msra.mxu0 %v291
      %379 = vmatprep.subr.mxu0 %v290
      %380 = vmatpush1.msra.mxu0 %v289
      %381 = vmatprep.subr.mxu0 %v288
      %382 = vmatpush1.msra.mxu0 %v287
      %383 = vmatprep.subr.mxu0 %v286
      %384 = vmatpush1.msra.mxu0 %v285
      %385 = vmatprep.subr.mxu0 %v284
      %386 = vmatpush1.msra.mxu0 %v283
      %387 = vmatprep.subr.mxu0 %v282
      %388 = vmatpush1.msra.mxu0 %v281
      %389 = vmatprep.subr.mxu0 %v344
      %390 = vmatpush2.msra.mxu0 %v343
      %391 = vmatprep.subr.mxu0 %v342
      %392 = vmatpush2.msra.mxu0 %v341
      %393 = vmatprep.subr.mxu0 %v340
      %394 = vmatpush2.msra.mxu0 %v339
      %395 = vmatprep.subr.mxu0 %v338
      %396 = vmatpush2.msra.mxu0 %v337
      %397 = vmatprep.subr.mxu0 %v336
      %398 = vmatpush2.msra.mxu0 %v335
      %399 = vmatprep.subr.mxu0 %v334
      %400 = vmatpush2.msra.mxu0 %v333
      %401 = vmatprep.subr.mxu0 %v332
      %402 = vmatpush2.msra.mxu0 %v331
      %403 = vmatprep.subr.mxu0 %v330
      %404 = vmatpush2.msra.mxu0 %v329
      %405 = vmatprep.subr.mxu0 %v328
      %406 = vmatpush2.msra.mxu0 %v327
      %407 = vmatprep.subr.mxu0 %v326
      %408 = vmatpush2.msra.mxu0 %v325
      %409 = vmatprep.subr.mxu0 %v324
      %410 = vmatpush2.msra.mxu0 %v323
      %411 = vmatprep.subr.mxu0 %v322
      %412 = vmatpush2.msra.mxu0 %v321
      %413 = vmatprep.subr.mxu0 %v320
      %414 = vmatpush2.msra.mxu0 %v319
      %415 = vmatprep.subr.mxu0 %v318
      %416 = vmatpush2.msra.mxu0 %v317
      %417 = vmatprep.subr.mxu0 %v316
      %418 = vmatpush2.msra.mxu0 %v315
      %419 = vmatprep.subr.mxu0 %v314
      %420 = vmatpush2.msra.mxu0 %v313
      %421 = vmatprep.mubr.f32.mxu0 %v280
      %422 = vmatmul.mubr.f32.gmra.mxu0 %v279
      %v423 = vpop.f32.mrf.mxu0
      %v424 = vadd.f32 %v350, %v423
      %v425 = vpop.f32.mrf.mxu0
      %v426 = vadd.f32 %v354, %v425
      %427 = vdwg.mxu0
      %v428 = vmax.f32 %v424, 0.0
      %v429 = vmax.f32 %v426, 0.0
      %v430 = vld [vmem:[%s3] sm:$0xff]
      %v431 = vld [vmem:[%s3 + $0x8] sm:$0xff]
      %v432 = vld [vmem:[%s3 + $0x10] sm:$0xff]
      %v433 = vld [vmem:[%s3 + $0x18] sm:$0xff]
      %v434 = vld [vmem:[%s3 + $0x20] sm:$0xff]
      %v435 = vld [vmem:[%s3 + $0x28] sm:$0xff]
      %v436 = vld [vmem:[%s3 + $0x30] sm:$0xff]
      %v437 = vld [vmem:[%s3 + $0x38] sm:$0xff]
      %v438 = vld [vmem:[%s3 + $0x40] sm:$0xff]
      %v439 = vld [vmem:[%s3 + $0x48] sm:$0xff]
      %v440 = vld [vmem:[%s3 + $0x50] sm:$0xff]
      %v441 = vld [vmem:[%s3 + $0x58] sm:$0xff]
      %v442 = vld [vmem:[%s3 + $0x60] sm:$0xff]
      %v443 = vld [vmem:[%s3 + $0x68] sm:$0xff]
      %v444 = vld [vmem:[%s3 + $0x70] sm:$0xff]
      %v445 = vld [vmem:[%s3 + $0x78] sm:$0xff]
      %v446 = vld [vmem:[%s3 + $0x80] sm:$0xff]
      %v447 = vld [vmem:[%s3 + $0x88] sm:$0xff]
      %v448 = vld [vmem:[%s3 + $0x90] sm:$0xff]
      %v449 = vld [vmem:[%s3 + $0x98] sm:$0xff]
      %v450 = vld [vmem:[%s3 + $0xa0] sm:$0xff]
      %v451 = vld [vmem:[%s3 + $0xa8] sm:$0xff]
      %v452 = vld [vmem:[%s3 + $0xb0] sm:$0xff]
      %v453 = vld [vmem:[%s3 + $0xb8] sm:$0xff]
      %v454 = vld [vmem:[%s3 + $0xc0] sm:$0xff]
      %v455 = vld [vmem:[%s3 + $0xc8] sm:$0xff]
      %v456 = vld [vmem:[%s3 + $0xd0] sm:$0xff]
      %v457 = vld [vmem:[%s3 + $0xd8] sm:$0xff]
      %v458 = vld [vmem:[%s3 + $0xe0] sm:$0xff]
      %v459 = vld [vmem:[%s3 + $0xe8] sm:$0xff]
      %v460 = vld [vmem:[%s3 + $0xf0] sm:$0xff]
      %v461 = vld [vmem:[%s3 + $0xf8] sm:$0xff]
      %v462 = vld [vmem:[%s3 + $0x100] sm:$0xff]
      %v463 = vld [vmem:[%s3 + $0x108] sm:$0xff]
      %v464 = vld [vmem:[%s3 + $0x110] sm:$0xff]
      %v465 = vld [vmem:[%s3 + $0x118] sm:$0xff]
      %v466 = vld [vmem:[%s3 + $0x120] sm:$0xff]
      %v467 = vld [vmem:[%s3 + $0x128] sm:$0xff]
      %v468 = vld [vmem:[%s3 + $0x130] sm:$0xff]
      %v469 = vld [vmem:[%s3 + $0x138] sm:$0xff]
      %v470 = vld [vmem:[%s3 + $0x140] sm:$0xff]
      %v471 = vld [vmem:[%s3 + $0x148] sm:$0xff]
      %v472 = vld [vmem:[%s3 + $0x150] sm:$0xff]
      %v473 = vld [vmem:[%s3 + $0x158] sm:$0xff]
      %v474 = vld [vmem:[%s3 + $0x160] sm:$0xff]
      %v475 = vld [vmem:[%s3 + $0x168] sm:$0xff]
      %v476 = vld [vmem:[%s3 + $0x170] sm:$0xff]
      %v477 = vld [vmem:[%s3 + $0x178] sm:$0xff]
      %v478 = vld [vmem:[%s3 + $0x180] sm:$0xff]
      %v479 = vld [vmem:[%s3 + $0x188] sm:$0xff]
      %v480 = vld [vmem:[%s3 + $0x190] sm:$0xff]
      %v481 = vld [vmem:[%s3 + $0x198] sm:$0xff]
      %v482 = vld [vmem:[%s3 + $0x1a0] sm:$0xff]
      %v483 = vld [vmem:[%s3 + $0x1a8] sm:$0xff]
      %v484 = vld [vmem:[%s3 + $0x1b0] sm:$0xff]
      %v485 = vld [vmem:[%s3 + $0x1b8] sm:$0xff]
      %v486 = vld [vmem:[%s3 + $0x1c0] sm:$0xff]
      %v487 = vld [vmem:[%s3 + $0x1c8] sm:$0xff]
      %v488 = vld [vmem:[%s3 + $0x1d0] sm:$0xff]
      %v489 = vld [vmem:[%s3 + $0x1d8] sm:$0xff]
      %v490 = vld [vmem:[%s3 + $0x1e0] sm:$0xff]
      %v491 = vld [vmem:[%s3 + $0x1e8] sm:$0xff]
      %v492 = vld [vmem:[%s3 + $0x1f0] sm:$0xff]
      %v493 = vld [vmem:[%s3 + $0x1f8] sm:$0xff]
      %v494 = vld [vmem:[%s4] sm:$0x3]
      %v496 = vlaneseq
      %v497 = vshrl.u32 %v496, 7
      %v498 = vsub.s32 0, %v497
      %v499 = vrot.slane %v494, %v498
      %v500 = vlaneseq
      %v501 = vshrl.u32 %v500, 7
      %v502 = vsub.s32 1, %v501
      %v503 = vrot.slane %v494, %v502
      %506 = vmatprep.subr.mxu0 %v461
      %507 = vmatpush1.msra.mxu0 %v460
      %508 = vmatprep.subr.mxu0 %v459
      %509 = vmatpush1.msra.mxu0 %v458
      %510 = vmatprep.subr.mxu0 %v457
      %511 = vmatpush1.msra.mxu0 %v456
      %512 = vmatprep.subr.mxu0 %v455
      %513 = vmatpush1.msra.mxu0 %v454
      %514 = vmatprep.subr.mxu0 %v453
      %515 = vmatpush1.msra.mxu0 %v452
      %516 = vmatprep.subr.mxu0 %v451
      %517 = vmatpush1.msra.mxu0 %v450
      %518 = vmatprep.subr.mxu0 %v449
      %519 = vmatpush1.msra.mxu0 %v448
      %520 = vmatprep.subr.mxu0 %v447
      %521 = vmatpush1.msra.mxu0 %v446
      %522 = vmatprep.subr.mxu0 %v445
      %523 = vmatpush1.msra.mxu0 %v444
      %524 = vmatprep.subr.mxu0 %v443
      %525 = vmatpush1.msra.mxu0 %v442
      %526 = vmatprep.subr.mxu0 %v441
      %527 = vmatpush1.msra.mxu0 %v440
      %528 = vmatprep.subr.mxu0 %v439
      %529 = vmatpush1.msra.mxu0 %v438
      %530 = vmatprep.subr.mxu0 %v437
      %531 = vmatpush1.msra.mxu0 %v436
      %532 = vmatprep.subr.mxu0 %v435
      %533 = vmatpush1.msra.mxu0 %v434
      %534 = vmatprep.subr.mxu0 %v433
      %535 = vmatpush1.msra.mxu0 %v432
      %536 = vmatprep.subr.mxu0 %v431
      %537 = vmatpush1.msra.mxu0 %v430
      %538 = vmatprep.subr.mxu0 %v493
      %539 = vmatpush2.msra.mxu0 %v492
      %540 = vmatprep.subr.mxu0 %v491
      %541 = vmatpush2.msra.mxu0 %v490
      %542 = vmatprep.subr.mxu0 %v489
      %543 = vmatpush2.msra.mxu0 %v488
      %544 = vmatprep.subr.mxu0 %v487
      %545 = vmatpush2.msra.mxu0 %v486
      %546 = vmatprep.subr.mxu0 %v485
      %547 = vmatpush2.msra.mxu0 %v484
      %548 = vmatprep.subr.mxu0 %v483
      %549 = vmatpush2.msra.mxu0 %v482
      %550 = vmatprep.subr.mxu0 %v481
      %551 = vmatpush2.msra.mxu0 %v480
      %552 = vmatprep.subr.mxu0 %v479
      %553 = vmatpush2.msra.mxu0 %v478
      %554 = vmatprep.subr.mxu0 %v477
      %555 = vmatpush2.msra.mxu0 %v476
      %556 = vmatprep.subr.mxu0 %v475
      %557 = vmatpush2.msra.mxu0 %v474
      %558 = vmatprep.subr.mxu0 %v473
      %559 = vmatpush2.msra.mxu0 %v472
      %560 = vmatprep.subr.mxu0 %v471
      %561 = vmatpush2.msra.mxu0 %v470
      %562 = vmatprep.subr.mxu0 %v469
      %563 = vmatpush2.msra.mxu0 %v468
      %564 = vmatprep.subr.mxu0 %v467
      %565 = vmatpush2.msra.mxu0 %v466
      %566 = vmatprep.subr.mxu0 %v465
      %567 = vmatpush2.msra.mxu0 %v464
      %568 = vmatprep.subr.mxu0 %v463
      %569 = vmatpush2.msra.mxu0 %v462
      %570 = vmatprep.mubr.f32.mxu0 %v429
      %571 = vmatmul.mubr.f32.gmra.mxu0 %v428
      %v572 = vpop.f32.mrf.mxu0
      %v573 = vadd.f32 %v499, %v572
      %v574 = vpop.f32.mrf.mxu0
      %v575 = vadd.f32 %v503, %v574
      %576 = vdwg.mxu0
      %v577 = vmax.f32 %v573, 0.0
      %v578 = vmax.f32 %v575, 0.0
      %v579 = vld [vmem:[%s5] sm:$0xff]
      %v580 = vld [vmem:[%s5 + $0x8] sm:$0xff]
      %v581 = vld [vmem:[%s5 + $0x10] sm:$0xff]
      %v582 = vld [vmem:[%s5 + $0x18] sm:$0xff]
      %v583 = vld [vmem:[%s5 + $0x20] sm:$0xff]
      %v584 = vld [vmem:[%s5 + $0x28] sm:$0xff]
      %v585 = vld [vmem:[%s5 + $0x30] sm:$0xff]
      %v586 = vld [vmem:[%s5 + $0x38] sm:$0xff]
      %v587 = vld [vmem:[%s5 + $0x40] sm:$0xff]
      %v588 = vld [vmem:[%s5 + $0x48] sm:$0xff]
      %v589 = vld [vmem:[%s5 + $0x50] sm:$0xff]
      %v590 = vld [vmem:[%s5 + $0x58] sm:$0xff]
      %v591 = vld [vmem:[%s5 + $0x60] sm:$0xff]
      %v592 = vld [vmem:[%s5 + $0x68] sm:$0xff]
      %v593 = vld [vmem:[%s5 + $0x70] sm:$0xff]
      %v594 = vld [vmem:[%s5 + $0x78] sm:$0xff]
      %v595 = vld [vmem:[%s5 + $0x80] sm:$0xff]
      %v596 = vld [vmem:[%s5 + $0x88] sm:$0xff]
      %v597 = vld [vmem:[%s5 + $0x90] sm:$0xff]
      %v598 = vld [vmem:[%s5 + $0x98] sm:$0xff]
      %v599 = vld [vmem:[%s5 + $0xa0] sm:$0xff]
      %v600 = vld [vmem:[%s5 + $0xa8] sm:$0xff]
      %v601 = vld [vmem:[%s5 + $0xb0] sm:$0xff]
      %v602 = vld [vmem:[%s5 + $0xb8] sm:$0xff]
      %v603 = vld [vmem:[%s5 + $0xc0] sm:$0xff]
      %v604 = vld [vmem:[%s5 + $0xc8] sm:$0xff]
      %v605 = vld [vmem:[%s5 + $0xd0] sm:$0xff]
      %v606 = vld [vmem:[%s5 + $0xd8] sm:$0xff]
      %v607 = vld [vmem:[%s5 + $0xe0] sm:$0xff]
      %v608 = vld [vmem:[%s5 + $0xe8] sm:$0xff]
      %v609 = vld [vmem:[%s5 + $0xf0] sm:$0xff]
      %v610 = vld [vmem:[%s5 + $0xf8] sm:$0xff]
      %v611 = vld [vmem:[%s5 + $0x100] sm:$0xff]
      %v612 = vld [vmem:[%s5 + $0x108] sm:$0xff]
      %v613 = vld [vmem:[%s5 + $0x110] sm:$0xff]
      %v614 = vld [vmem:[%s5 + $0x118] sm:$0xff]
      %v615 = vld [vmem:[%s5 + $0x120] sm:$0xff]
      %v616 = vld [vmem:[%s5 + $0x128] sm:$0xff]
      %v617 = vld [vmem:[%s5 + $0x130] sm:$0xff]
      %v618 = vld [vmem:[%s5 + $0x138] sm:$0xff]
      %v619 = vld [vmem:[%s5 + $0x140] sm:$0xff]
      %v620 = vld [vmem:[%s5 + $0x148] sm:$0xff]
      %v621 = vld [vmem:[%s5 + $0x150] sm:$0xff]
      %v622 = vld [vmem:[%s5 + $0x158] sm:$0xff]
      %v623 = vld [vmem:[%s5 + $0x160] sm:$0xff]
      %v624 = vld [vmem:[%s5 + $0x168] sm:$0xff]
      %v625 = vld [vmem:[%s5 + $0x170] sm:$0xff]
      %v626 = vld [vmem:[%s5 + $0x178] sm:$0xff]
      %v627 = vld [vmem:[%s5 + $0x180] sm:$0xff]
      %v628 = vld [vmem:[%s5 + $0x188] sm:$0xff]
      %v629 = vld [vmem:[%s5 + $0x190] sm:$0xff]
      %v630 = vld [vmem:[%s5 + $0x198] sm:$0xff]
      %v631 = vld [vmem:[%s5 + $0x1a0] sm:$0xff]
      %v632 = vld [vmem:[%s5 + $0x1a8] sm:$0xff]
      %v633 = vld [vmem:[%s5 + $0x1b0] sm:$0xff]
      %v634 = vld [vmem:[%s5 + $0x1b8] sm:$0xff]
      %v635 = vld [vmem:[%s5 + $0x1c0] sm:$0xff]
      %v636 = vld [vmem:[%s5 + $0x1c8] sm:$0xff]
      %v637 = vld [vmem:[%s5 + $0x1d0] sm:$0xff]
      %v638 = vld [vmem:[%s5 + $0x1d8] sm:$0xff]
      %v639 = vld [vmem:[%s5 + $0x1e0] sm:$0xff]
      %v640 = vld [vmem:[%s5 + $0x1e8] sm:$0xff]
      %v641 = vld [vmem:[%s5 + $0x1f0] sm:$0xff]
      %v642 = vld [vmem:[%s5 + $0x1f8] sm:$0xff]
      %v643 = vld [vmem:[%s6] sm:$0x3]
      %v645 = vlaneseq
      %v646 = vshrl.u32 %v645, 7
      %v647 = vsub.s32 0, %v646
      %v648 = vrot.slane %v643, %v647
      %v649 = vlaneseq
      %v650 = vshrl.u32 %v649, 7
      %v651 = vsub.s32 1, %v650
      %v652 = vrot.slane %v643, %v651
      %655 = vmatprep.subr.mxu0 %v610
      %656 = vmatpush1.msra.mxu0 %v609
      %657 = vmatprep.subr.mxu0 %v608
      %658 = vmatpush1.msra.mxu0 %v607
      %659 = vmatprep.subr.mxu0 %v606
      %660 = vmatpush1.msra.mxu0 %v605
      %661 = vmatprep.subr.mxu0 %v604
      %662 = vmatpush1.msra.mxu0 %v603
      %663 = vmatprep.subr.mxu0 %v602
      %664 = vmatpush1.msra.mxu0 %v601
      %665 = vmatprep.subr.mxu0 %v600
      %666 = vmatpush1.msra.mxu0 %v599
      %667 = vmatprep.subr.mxu0 %v598
      %668 = vmatpush1.msra.mxu0 %v597
      %669 = vmatprep.subr.mxu0 %v596
      %670 = vmatpush1.msra.mxu0 %v595
      %671 = vmatprep.subr.mxu0 %v594
      %672 = vmatpush1.msra.mxu0 %v593
      %673 = vmatprep.subr.mxu0 %v592
      %674 = vmatpush1.msra.mxu0 %v591
      %675 = vmatprep.subr.mxu0 %v590
      %676 = vmatpush1.msra.mxu0 %v589
      %677 = vmatprep.subr.mxu0 %v588
      %678 = vmatpush1.msra.mxu0 %v587
      %679 = vmatprep.subr.mxu0 %v586
      %680 = vmatpush1.msra.mxu0 %v585
      %681 = vmatprep.subr.mxu0 %v584
      %682 = vmatpush1.msra.mxu0 %v583
      %683 = vmatprep.subr.mxu0 %v582
      %684 = vmatpush1.msra.mxu0 %v581
      %685 = vmatprep.subr.mxu0 %v580
      %686 = vmatpush1.msra.mxu0 %v579
      %687 = vmatprep.subr.mxu0 %v642
      %688 = vmatpush2.msra.mxu0 %v641
      %689 = vmatprep.subr.mxu0 %v640
      %690 = vmatpush2.msra.mxu0 %v639
      %691 = vmatprep.subr.mxu0 %v638
      %692 = vmatpush2.msra.mxu0 %v637
      %693 = vmatprep.subr.mxu0 %v636
      %694 = vmatpush2.msra.mxu0 %v635
      %695 = vmatprep.subr.mxu0 %v634
      %696 = vmatpush2.msra.mxu0 %v633
      %697 = vmatprep.subr.mxu0 %v632
      %698 = vmatpush2.msra.mxu0 %v631
      %699 = vmatprep.subr.mxu0 %v630
      %700 = vmatpush2.msra.mxu0 %v629
      %701 = vmatprep.subr.mxu0 %v628
      %702 = vmatpush2.msra.mxu0 %v627
      %703 = vmatprep.subr.mxu0 %v626
      %704 = vmatpush2.msra.mxu0 %v625
      %705 = vmatprep.subr.mxu0 %v624
      %706 = vmatpush2.msra.mxu0 %v623
      %707 = vmatprep.subr.mxu0 %v622
      %708 = vmatpush2.msra.mxu0 %v621
      %709 = vmatprep.subr.mxu0 %v620
      %710 = vmatpush2.msra.mxu0 %v619
      %711 = vmatprep.subr.mxu0 %v618
      %712 = vmatpush2.msra.mxu0 %v617
      %713 = vmatprep.subr.mxu0 %v616
      %714 = vmatpush2.msra.mxu0 %v615
      %715 = vmatprep.subr.mxu0 %v614
      %716 = vmatpush2.msra.mxu0 %v613
      %717 = vmatprep.subr.mxu0 %v612
      %718 = vmatpush2.msra.mxu0 %v611
      %719 = vmatprep.mubr.f32.mxu0 %v578
      %720 = vmatmul.mubr.f32.gmra.mxu0 %v577
      %v721 = vpop.f32.mrf.mxu0
      %v722 = vadd.f32 %v648, %v721
      %v723 = vpop.f32.mrf.mxu0
      %v724 = vadd.f32 %v652, %v723
      %725 = vdwg.mxu0
      %726 = vst [vmem:[%s278] sm:$0xff] %v722
      %727 = vst [vmem:[%s278 + $0x8] sm:$0xff] %v724
      %p728 = scmp.lt.s32.totalorder %s18, 1
      %s729 = scalar_select %p728, %s18, 1
      %s730 = smul.addr %s729, 2
      %s731 = smul.addr %s730, 8
      %s732 = scalar_lea.vmem %s7, %s731
      // Predicated region
      $region49: #{two_layer_fc.1} parent=47 // pred_check
        %p733 = pneg %p188
      $region50: #{two_layer_fc.1} parent=47 // pred_check_branch
        %735 = sbr.rel (%p733) target = $region52
      $region51: #{two_layer_fc.1} parent=47 // pred_region
        _
      $region52: #{two_layer_fc.1} parent=47 // pred_fallthru
        _
    $region48: #{two_layer_fc.1} parent=5 // pred_fallthru
      _
    %p736 = scmp.le.s32.totalorder 2, %s13
    // Predicated region
    $region53: #{two_layer_fc.1} parent=5 // pred_check
      %p737 = pneg %p736
    $region54: #{two_layer_fc.1} parent=5 // pred_check_branch
      %739 = sbr.rel (%p737) target = $region56
    $region55: #{two_layer_fc.1} parent=5 // pred_region
      %s740 = ssub.s32 %s13, 2
      // Predicated region
      $region57: #{two_layer_fc.1} parent=55 // pred_check
        %p741 = pneg %p194
      $region58: #{two_layer_fc.1} parent=55 // pred_check_branch
        %743 = sbr.rel (%p741) target = $region60
      $region59: #{two_layer_fc.1} parent=55 // pred_region
        %p744 = scmp.lt.s32.totalorder %s19, 1
        %s745 = scalar_select %p744, %s19, 1
        %s746 = smul.addr %s745, 2
        %s747 = smul.addr %s746, 8
        %s748 = scalar_lea.vmem %s7, %s747
      $region60: #{two_layer_fc.1} parent=55 // pred_fallthru
        _
    $region56: #{two_layer_fc.1} parent=5 // pred_fallthru
      _
  $region6: #{two_layer_fc.1} parent=0 // loop_footer
    %s17 = sadd.s32 1, %s13
  $region7: #{two_layer_fc.1} parent=0 // loop_footer_branch
    %12 = sbr.rel target = $region3
  $region8: #{two_layer_fc.1} parent=0 // loop_exit
    _

</llo_original>
